<compile_context>
chip_gen: v5e
topology: v5e:2x2
jax: 0.10.0
libtpu: 0.0.40
codegen_flags: <defaults>
</compile_context>

<pallas_src>
import functools

import jax
import jax.numpy as jnp
from jax.experimental import pallas as pl
from jax.experimental.pallas import tpu as pltpu

LANE = 128
ROW_ALIGN = 32     # covers f32 (8) and bf16 (16) sublane tiling


def _round_up(x, m):
    return ((x + m - 1) // m) * m


def _cdiv(a, b):
    return (a + b - 1) // b


def _tpu_vmem_capacity_bytes():
    try:
        info = pltpu.get_tpu_info()
        cap = getattr(info, "vmem_capacity_bytes", None)
        if cap:
            return int(cap)
    except Exception:
        pass
    return 64 * 1024 * 1024  # conservative default (v7x-sized)


_VMEM_CAP = _tpu_vmem_capacity_bytes()
if _VMEM_CAP >= 96 * 1024 * 1024:          # v5e / v6e: 128 MiB VMEM
    TILE_M_CAP, TILE_K_CAP = 512, 1024
    _VMEM_HARD_CAP = 100 * 1024 * 1024
else:                                       # v7x: 64 MiB VMEM per core
    TILE_M_CAP, TILE_K_CAP = 256, 512
    _VMEM_HARD_CAP = 48 * 1024 * 1024


def _vmem_limit_bytes(in_block_bytes, out_block_bytes, scratch_bytes):
    # Exact double-buffered pipeline footprint + persistent scratch + headroom.
    exact = 2 * (in_block_bytes + out_block_bytes) + scratch_bytes
    return int(min(_VMEM_HARD_CAP,
                   max(16 * 1024 * 1024, exact + 2 * 1024 * 1024)))


# ----------------------------- Pallas kernels -----------------------------

def _sage_fused_tf_kernel(a_ref, h_ref, xdst_ref, wr_ref, b_ref, o_ref,
                          *, apply_relu):
    """Transform-first: o += A_e @ H_e   with   H_e = X_src_e @ W_l_e (bf16)."""
    e = pl.program_id(1)
    s = pl.program_id(2)

    @pl.when((e == 0) & (s == 0))
    def _init():
        o_ref[...] = jnp.zeros_like(o_ref)

    o_ref[...] += jnp.dot(a_ref[0], h_ref[0],
                          preferred_element_type=jnp.float32)

    @pl.when((e == pl.num_programs(1) - 1) & (s == pl.num_programs(2) - 1))
    def _epilogue():
        out = o_ref[...]
        out = out + jnp.dot(xdst_ref[...], wr_ref[...],
                            preferred_element_type=jnp.float32)
        out = out + b_ref[...]
        if apply_relu:
            out = jnp.maximum(out, 0.0)
        o_ref[...] = out


def _sage_fused_af_kernel(slot_ref, a_ref, x_ref, wl_ref, xdst_ref, wr_ref,
                          b_ref, o_ref, agg_acc_ref, *, apply_relu):
    """Agg-first: o += (A_e @ X_src_e) @ W_l_e.  slot_ref only drives the
    X_src index_map (source de-dup); it is unused in the body."""
    del slot_ref
    e = pl.program_id(1)
    s = pl.program_id(2)
    last_e = pl.num_programs(1) - 1
    last_s = pl.num_programs(2) - 1

    @pl.when((e == 0) & (s == 0))
    def _init_out():
        o_ref[...] = jnp.zeros_like(o_ref)

    @pl.when(s == 0)
    def _init_agg():
        agg_acc_ref[...] = jnp.zeros_like(agg_acc_ref)

    agg_acc_ref[...] += jnp.dot(a_ref[0], x_ref[0],
                                preferred_element_type=jnp.float32)

    @pl.when(s == last_s)
    def _apply_wl():
        o_ref[...] += jnp.dot(agg_acc_ref[...].astype(jnp.bfloat16), wl_ref[0],
                              preferred_element_type=jnp.float32)

    @pl.when((e == last_e) & (s == last_s))
    def _epilogue():
        out = o_ref[...]
        out = out + jnp.dot(xdst_ref[...], wr_ref[...],
                            preferred_element_type=jnp.float32)
        out = out + b_ref[...]
        if apply_relu:
            out = jnp.maximum(out, 0.0)
        o_ref[...] = out


def _feat_transform_kernel(slot_ref, x_ref, w_ref, o_ref):
    """H_e = X_src[slot[e]] @ W_l_e  (bf16 in, f32 MXU acc, bf16 store)."""
    del slot_ref
    o_ref[0, :, :] = jnp.dot(x_ref[0], w_ref[0],
                             preferred_element_type=jnp.float32
                             ).astype(o_ref.dtype)


# ----------------------------- Pallas wrappers -----------------------------

def feature_transform(slot, x_src_stack, wl_stack, *, tk):
    n_src, ns_pad, cin_pad = x_src_stack.shape
    k, _, cout_pad = wl_stack.shape
    in_bytes = tk * cin_pad * 2 + cin_pad * cout_pad * 2
    out_bytes = tk * cout_pad * 2
    return pl.pallas_call(
        _feat_transform_kernel,
        out_shape=jax.ShapeDtypeStruct((k, ns_pad, cout_pad), jnp.bfloat16),
        grid_spec=pltpu.PrefetchScalarGridSpec(
            num_scalar_prefetch=1,
            grid=(k, ns_pad // tk),
            in_specs=[
                pl.BlockSpec((1, tk, cin_pad),
                             lambda e, s, slot: (slot[e], s, 0)),
                pl.BlockSpec((1, cin_pad, cout_pad),
                             lambda e, s, slot: (e, 0, 0)),
            ],
            out_specs=pl.BlockSpec((1, tk, cout_pad),
                                   lambda e, s, slot: (e, s, 0)),
        ),
        compiler_params=pltpu.CompilerParams(
            dimension_semantics=("parallel", "parallel"),
            vmem_limit_bytes=_vmem_limit_bytes(in_bytes, out_bytes, 0)),
    )(slot, x_src_stack, wl_stack)


def sage_fused_transform_first(a_stack, h_stack, x_dst, wr_sum, b_sum,
                               *, tm, tk, apply_relu):
    k, nd_pad, ns_pad = a_stack.shape
    cout_pad = h_stack.shape[2]
    cin_pad = x_dst.shape[1]
    grid = (nd_pad // tm, k, ns_pad // tk)
    n_row_tiles = nd_pad // tm

    in_bytes = (tm * tk * 2 + tk * cout_pad * 2 + tm * cin_pad * 2
                + cin_pad * cout_pad * 2 + cout_pad * 4)
    out_bytes = tm * cout_pad * 4
    flops = 2 * k * nd_pad * ns_pad * cout_pad + 2 * nd_pad * cin_pad * cout_pad
    bytes_accessed = (a_stack.size * 2 + h_stack.size * 2 * n_row_tiles
                      + x_dst.size * 2 + wr_sum.size * 2 + b_sum.size * 4
                      + nd_pad * cout_pad * 4)

    return pl.pallas_call(
        functools.partial(_sage_fused_tf_kernel, apply_relu=apply_relu),
        out_shape=jax.ShapeDtypeStruct((nd_pad, cout_pad), jnp.float32),
        grid=grid,
        in_specs=[
            pl.BlockSpec((1, tm, tk), lambda i, e, s: (e, i, s)),         # A
            pl.BlockSpec((1, tk, cout_pad), lambda i, e, s: (e, s, 0)),   # H
            pl.BlockSpec((tm, cin_pad), lambda i, e, s: (i, 0)),          # X_dst
            pl.BlockSpec((cin_pad, cout_pad), lambda i, e, s: (0, 0)),    # sum W_r
            pl.BlockSpec((1, cout_pad), lambda i, e, s: (0, 0)),          # sum b
        ],
        out_specs=pl.BlockSpec((tm, cout_pad), lambda i, e, s: (i, 0)),
        compiler_params=pltpu.CompilerParams(
            dimension_semantics=("parallel", "arbitrary", "arbitrary"),
            vmem_limit_bytes=_vmem_limit_bytes(in_bytes, out_bytes, 0)),
        cost_estimate=pl.CostEstimate(flops=int(flops), transcendentals=0,
                                      bytes_accessed=int(bytes_accessed)),
    )(a_stack, h_stack, x_dst, wr_sum, b_sum)


def sage_fused_agg_first(slot, a_stack, x_src_stack, wl_stack, x_dst, wr_sum,
                         b_sum, *, tm, tk, apply_relu):
    k, nd_pad, ns_pad = a_stack.shape
    cin_pad = x_src_stack.shape[2]
    cout_pad = wl_stack.shape[2]
    grid = (nd_pad // tm, k, ns_pad // tk)
    n_row_tiles = nd_pad // tm

    in_bytes = (tm * tk * 2 + tk * cin_pad * 2 + cin_pad * cout_pad * 2
                + tm * cin_pad * 2 + cin_pad * cout_pad * 2 + cout_pad * 4)
    out_bytes = tm * cout_pad * 4
    scratch_bytes = tm * cin_pad * 4
    flops = (2 * k * nd_pad * ns_pad * cin_pad
             + 2 * k * nd_pad * cin_pad * cout_pad
             + 2 * nd_pad * cin_pad * cout_pad)
    bytes_accessed = (a_stack.size * 2 + x_src_stack.size * 2 * n_row_tiles
                      + wl_stack.size * 2 + x_dst.size * 2 + wr_sum.size * 2
                      + b_sum.size * 4 + nd_pad * cout_pad * 4)

    return pl.pallas_call(
        functools.partial(_sage_fused_af_kernel, apply_relu=apply_relu),
        out_shape=jax.ShapeDtypeStruct((nd_pad, cout_pad), jnp.float32),
        grid_spec=pltpu.PrefetchScalarGridSpec(
            num_scalar_prefetch=1,
            grid=grid,
            in_specs=[
                pl.BlockSpec((1, tm, tk),
                             lambda i, e, s, slot: (e, i, s)),            # A
                pl.BlockSpec((1, tk, cin_pad),
                             lambda i, e, s, slot: (slot[e], s, 0)),      # X_src (dedup)
                pl.BlockSpec((1, cin_pad, cout_pad),
                             lambda i, e, s, slot: (e, 0, 0)),            # W_l
                pl.BlockSpec((tm, cin_pad),
                             lambda i, e, s, slot: (i, 0)),               # X_dst
                pl.BlockSpec((cin_pad, cout_pad),
                             lambda i, e, s, slot: (0, 0)),               # sum W_r
                pl.BlockSpec((1, cout_pad),
                             lambda i, e, s, slot: (0, 0)),               # sum b
            ],
            out_specs=pl.BlockSpec((tm, cout_pad),
                                   lambda i, e, s, slot: (i, 0)),
            scratch_shapes=[pltpu.VMEM((tm, cin_pad), jnp.float32)],
        ),
        compiler_params=pltpu.CompilerParams(
            dimension_semantics=("parallel", "arbitrary", "arbitrary"),
            vmem_limit_bytes=_vmem_limit_bytes(in_bytes, out_bytes,
                                               scratch_bytes)),
        cost_estimate=pl.CostEstimate(flops=int(flops), transcendentals=0,
                                      bytes_accessed=int(bytes_accessed)),
    )(slot, a_stack, x_src_stack, wl_stack, x_dst, wr_sum, b_sum)


# ----------------------------- Model glue -----------------------------

def edge_index_to_norm_adj(edge_index, num_src, num_dst):
    """Dense row-normalized adjacency (f32): A[d, s] = (#edges s->d) / in_deg(d)."""
    src = edge_index[0]
    dst = edge_index[1]
    a = jnp.zeros((num_dst, num_src), jnp.float32).at[dst, src].add(1.0)
    deg = jnp.sum(a, axis=1, keepdims=True)
    return a / jnp.maximum(deg, 1.0)          # isolated dst nodes -> zero row


def build_dst_groups(adj_dict, num_nodes_dict):
    """Group edge types by destination type; pad + stack adjacencies (bf16)."""
    by_dst = {}
    for et in adj_dict:
        by_dst.setdefault(et[2], []).append(et)
    groups = {}
    for dst_t, ets in by_dst.items():
        nd = num_nodes_dict[dst_t]
        # Distinct source node types (de-dup) + per-edge-type slot table.
        src_types = []
        for et in ets:
            if et[0] not in src_types:
                src_types.append(et[0])
        slot = jnp.asarray([src_types.index(et[0]) for et in ets], jnp.int32)
        max_ns = max(num_nodes_dict[t] for t in src_types)
        # >=2 destination-row tiles when nd allows, so the 'parallel' i axis
        # can be sharded across both TensorCores on 2-TC parts (v7x).
        tm = max(ROW_ALIGN, min(TILE_M_CAP, _round_up(_cdiv(nd, 2), ROW_ALIGN)))
        nd_pad = _round_up(nd, tm)
        tk = min(TILE_K_CAP, _round_up(max_ns, LANE))
        ns_pad = _round_up(max_ns, tk)
        a_list = []
        for et in ets:
            ns = num_nodes_dict[et[0]]
            a = adj_dict[et]
            a_list.append(jnp.pad(a, ((0, nd_pad - nd), (0, ns_pad - ns))))
        groups[dst_t] = dict(
            edge_types=ets, src_types=src_types, slot=slot,
            a_stack=jnp.stack(a_list, axis=0).astype(jnp.bfloat16),
            nd=nd, nd_pad=nd_pad, ns_pad=ns_pad, tm=tm, tk=tk)
    return groups


def hetero_conv_layer(x_dict, groups, params, apply_relu):
    """One HeteroConv(SAGEConv, aggr='sum') layer (+ optional ReLU)."""
    out = {}
    for dst_t, g in groups.items():
        ets = g["edge_types"]
        src_types = g["src_types"]
        nd, nd_pad, ns_pad = g["nd"], g["nd_pad"], g["ns_pad"]
        tm, tk = g["tm"], g["tk"]

        # Channel widths come from the layer weights (SAGEConv uses a single
        # in/out width per layer for every edge type and node type).
        cin = params[ets[0]][0].shape[0]
        cout = params[ets[0]][0].shape[1]
        cin_pad = _round_up(cin, LANE)
        cout_pad = _round_up(cout, LANE)

        # One de-duplicated bf16 source-feature stack per distinct src type.
        xs = []
        for src_t in src_types:
            x_src = x_dict[src_t]
            assert x_src.shape[1] == cin, "feature width must match W_l"
            xs.append(jnp.pad(x_src, ((0, ns_pad - x_src.shape[0]),
                                      (0, cin_pad - cin))))
        x_src_stack = jnp.stack(xs, axis=0).astype(jnp.bfloat16)

        wls = []
        wr_sum = jnp.zeros((cin_pad, cout_pad), jnp.float32)
        b_sum = jnp.zeros((1, cout_pad), jnp.float32)
        for et in ets:
            w_l, b_l, w_r = params[et]
            wls.append(jnp.pad(w_l, ((0, cin_pad - cin), (0, cout_pad - cout))))
            wr_sum = wr_sum + jnp.pad(w_r, ((0, cin_pad - cin),
                                            (0, cout_pad - cout)))
            b_sum = b_sum + jnp.pad(b_l, (0, cout_pad - cout))[None, :]
        wl_stack = jnp.stack(wls, axis=0).astype(jnp.bfloat16)
        wr_sum = wr_sum.astype(jnp.bfloat16)

        assert x_dict[dst_t].shape[1] == cin, "root feature width must match W_r"
        x_dst = jnp.pad(x_dict[dst_t],
                        ((0, nd_pad - nd), (0, cin_pad - cin))
                        ).astype(jnp.bfloat16)

        # Stream the narrower operand through the big A contraction.
        agg_first = (cin_pad, cin) < (cout_pad, cout)
        if agg_first:
            y = sage_fused_agg_first(
                g["slot"], g["a_stack"], x_src_stack, wl_stack,
                x_dst, wr_sum, b_sum, tm=tm, tk=tk, apply_relu=apply_relu)
        else:
            h_stack = feature_transform(g["slot"], x_src_stack, wl_stack, tk=tk)
            y = sage_fused_transform_first(
                g["a_stack"], h_stack, x_dst, wr_sum, b_sum,
                tm=tm, tk=tk, apply_relu=apply_relu)
        out[dst_t] = y[:nd, :cout]
    return out


def hetero_graph_sage(x_dict, groups, params1, params2):
    x_dict = hetero_conv_layer(x_dict, groups, params1, apply_relu=True)
    x_dict = hetero_conv_layer(x_dict, groups, params2, apply_relu=False)
    return x_dict


def init_sage_params(key, edge_types, c_in, c_out):
    """Per edge type: (W_l [c_in,c_out], b_l [c_out], W_r [c_in,c_out]).

    Matches PyG SAGEConv: lin_l (with bias) on the mean-aggregated neighbors,
    lin_r (no bias) on the destination/root features.
    """
    params = {}
    for et in edge_types:
        key, k1, k2, k3 = jax.random.split(key, 4)
        scale = 1.0 / jnp.sqrt(jnp.float32(c_in))
        w_l = jax.random.normal(k1, (c_in, c_out), jnp.float32) * scale
        w_r = jax.random.normal(k2, (c_in, c_out), jnp.float32) * scale
        b_l = jax.random.normal(k3, (c_out,), jnp.float32) * 0.1
        params[et] = (w_l, b_l, w_r)
    return params, key


def reference_forward(x_dict, adj_dict, params1, params2, edge_types):
    """Plain-JAX f32 reference of the same forward (dense A_norm path)."""
    def layer(xd, params, relu):
        per_dst = {}
        for et in edge_types:
            src_t, _, dst_t = et
            w_l, b_l, w_r = params[et]
            y = (adj_dict[et] @ xd[src_t]) @ w_l + b_l + xd[dst_t] @ w_r
            per_dst.setdefault(dst_t, []).append(y)
        out = {t: functools.reduce(jnp.add, ys) for t, ys in per_dst.items()}
        if relu:
            out = {t: jnp.maximum(v, 0.0) for t, v in out.items()}
        return out
    h = layer(x_dict, params1, True)
    return layer(h, params2, False)


# ----------------------------- Demo -----------------------------

if __name__ == "__main__":
    key = jax.random.PRNGKey(0)

    num_nodes = {"user": 16, "item": 24}
    metadata = {
        "node_types": ["user", "item"],
        "edge_types": [
            ("user", "buys", "item"),
            ("item", "rev_buys", "user"),
            ("user", "follows", "user"),
        ],
    }
    in_channels, hidden_channels, out_channels = 8, 32, 16
    num_edges = 48

    # Node features.
    x_dict = {}
    for nt in metadata["node_types"]:
        key, sub = jax.random.split(key)
        x_dict[nt] = jax.random.normal(sub, (num_nodes[nt], in_channels),
                                       jnp.float32)

    # Edge indices (2, E): row 0 = src ids, row 1 = dst ids.
    edge_index_dict = {}
    for (src_t, rel, dst_t) in metadata["edge_types"]:
        key, ks, kd = jax.random.split(key, 3)
        src_ids = jax.random.randint(ks, (num_edges,), 0, num_nodes[src_t])
        dst_ids = jax.random.randint(kd, (num_edges,), 0, num_nodes[dst_t])
        edge_index_dict[(src_t, rel, dst_t)] = jnp.stack([src_ids, dst_ids], 0)

    # Dense row-normalized adjacencies (glue; scatter stays in plain JAX).
    adj_dict = {
        et: edge_index_to_norm_adj(ei, num_nodes[et[0]], num_nodes[et[2]])
        for et, ei in edge_index_dict.items()
    }
    groups = build_dst_groups(adj_dict, num_nodes)

    params1, key = init_sage_params(key, metadata["edge_types"],
                                    in_channels, hidden_channels)
    params2, key = init_sage_params(key, metadata["edge_types"],
                                    hidden_channels, out_channels)

    out_dict = hetero_graph_sage(x_dict, groups, params1, params2)
    out_dict = {k: jax.block_until_ready(v) for k, v in out_dict.items()}

    assert out_dict["user"].shape == (num_nodes["user"], out_channels)
    assert out_dict["item"].shape == (num_nodes["item"], out_channels)

    # Numerical sanity check against a plain-JAX f32 reference (bf16 streaming
    # in the kernel -> generous tolerance).
    ref = reference_forward(x_dict, adj_dict, params1, params2,
                            metadata["edge_types"])
    for nt, val in out_dict.items():
        err = float(jnp.max(jnp.abs(val - ref[nt])))
        assert jnp.allclose(val, ref[nt], rtol=1e-1, atol=1e-1), \
            f"mismatch for {nt}: max abs err {err}"

    print("KERNEL_OK")
</pallas_src>

<mosaic_0001>
module attributes {stable_mosaic.version = 11 : i64} {
  func.func @_sage_fused_af_kernel(%arg0: i32, %arg1: i32, %arg2: i32, %arg3: memref<1xi32, #tpu.memory_space<smem>>, %arg4: memref<1x32x128xbf16, #tpu.memory_space<vmem>>, %arg5: memref<1x128x128xbf16, #tpu.memory_space<vmem>>, %arg6: memref<1x128x128xbf16, #tpu.memory_space<vmem>>, %arg7: memref<32x128xbf16, #tpu.memory_space<vmem>>, %arg8: memref<128x128xbf16, #tpu.memory_space<vmem>>, %arg9: memref<1x128xf32, #tpu.memory_space<vmem>>, %arg10: memref<32x128xf32, #tpu.memory_space<vmem>>, %arg11: memref<32x128xf32, #tpu.memory_space<vmem>>) attributes {dimension_semantics = [#tpu.dimension_semantics<parallel>, #tpu.dimension_semantics<arbitrary>, #tpu.dimension_semantics<arbitrary>], iteration_bounds = array<i64: 1, 1, 1>, scalar_prefetch = 1 : i64, scratch_operands = 1 : i64, tpu.core_type = #tpu.core_type<tc>, window_params = [{transform_indices = @transform_0, window_bounds = array<i64: 1, 32, 128>}, {transform_indices = @transform_1, window_bounds = array<i64: 1, 128, 128>}, {transform_indices = @transform_2, window_bounds = array<i64: 1, 128, 128>}, {transform_indices = @transform_3, window_bounds = array<i64: 32, 128>}, {pipeline_mode = #tpu.pipeline_mode<synchronous>, transform_indices = @transform_4, window_bounds = array<i64: 128, 128>}, {pipeline_mode = #tpu.pipeline_mode<synchronous>, transform_indices = @transform_5, window_bounds = array<i64: 1, 128>}, {transform_indices = @transform_6, window_bounds = array<i64: 32, 128>}]} {
    %c0_i32 = arith.constant 0 : i32
    %0 = arith.cmpi eq, %arg1, %c0_i32 : i32
    %c0_i32_0 = arith.constant 0 : i32
    %1 = arith.cmpi eq, %arg2, %c0_i32_0 : i32
    %2 = arith.andi %0, %1 : i1
    %3 = arith.extui %2 : i1 to i32
    %c0_i32_1 = arith.constant 0 : i32
    %4 = arith.cmpi ne, %3, %c0_i32_1 : i32
    scf.if %4 {
      %cst_18 = arith.constant 0.000000e+00 : f32
      %24 = vector.broadcast %cst_18 : f32 to vector<32x128xf32>
      %c0_19 = arith.constant 0 : index
      %c0_20 = arith.constant 0 : index
      %25 = vector.load %arg10[%c0_19, %c0_20] : memref<32x128xf32, #tpu.memory_space<vmem>>, vector<32x128xf32>
      tpu.vector_store %arg10[%c0_19, %c0_20], %24 {strides = array<i32>} : memref<32x128xf32, #tpu.memory_space<vmem>>, vector<32x128xf32>,
    } else {
    }
    %c0_i32_2 = arith.constant 0 : i32
    %5 = arith.cmpi eq, %arg2, %c0_i32_2 : i32
    %6 = arith.extui %5 : i1 to i32
    %c0_i32_3 = arith.constant 0 : i32
    %7 = arith.cmpi ne, %6, %c0_i32_3 : i32
    scf.if %7 {
      %cst_18 = arith.constant 0.000000e+00 : f32
      %24 = vector.broadcast %cst_18 : f32 to vector<32x128xf32>
      %c0_19 = arith.constant 0 : index
      %c0_20 = arith.constant 0 : index
      %25 = vector.load %arg11[%c0_19, %c0_20] : memref<32x128xf32, #tpu.memory_space<vmem>>, vector<32x128xf32>
      tpu.vector_store %arg11[%c0_19, %c0_20], %24 {strides = array<i32>} : memref<32x128xf32, #tpu.memory_space<vmem>>, vector<32x128xf32>,
    } else {
    }
    %c0 = arith.constant 0 : index
    %c0_4 = arith.constant 0 : index
    %8 = vector.load %arg11[%c0, %c0_4] : memref<32x128xf32, #tpu.memory_space<vmem>>, vector<32x128xf32>
    %c0_5 = arith.constant 0 : index
    %c0_6 = arith.constant 0 : index
    %c0_7 = arith.constant 0 : index
    %9 = vector.load %arg4[%c0_5, %c0_6, %c0_7] : memref<1x32x128xbf16, #tpu.memory_space<vmem>>, vector<1x32x128xbf16>
    %10 = vector.shape_cast %9 : vector<1x32x128xbf16> to vector<32x128xbf16>
    %c0_8 = arith.constant 0 : index
    %c0_9 = arith.constant 0 : index
    %c0_10 = arith.constant 0 : index
    %11 = vector.load %arg5[%c0_8, %c0_9, %c0_10] : memref<1x128x128xbf16, #tpu.memory_space<vmem>>, vector<1x128x128xbf16>
    %12 = vector.shape_cast %11 : vector<1x128x128xbf16> to vector<128x128xbf16>
    %cst = arith.constant dense<0.000000e+00> : vector<32x128xf32>
    %13 = tpu.matmul %10, %12, %cst {dimension_numbers = #tpu.dot_dimension_numbers<[1], [0], [0], [1], [0, 0, 1, 1], [], []>} : vector<32x128xbf16>, vector<128x128xbf16>, vector<32x128xf32> -> vector<32x128xf32>
    %14 = arith.addf %8, %13 : vector<32x128xf32>
    %c0_11 = arith.constant 0 : index
    %c0_12 = arith.constant 0 : index
    %15 = vector.load %arg11[%c0_11, %c0_12] : memref<32x128xf32, #tpu.memory_space<vmem>>, vector<32x128xf32>
    tpu.vector_store %arg11[%c0_11, %c0_12], %14 {strides = array<i32>} : memref<32x128xf32, #tpu.memory_space<vmem>>, vector<32x128xf32>,
    %c0_i32_13 = arith.constant 0 : i32
    %16 = arith.cmpi eq, %arg2, %c0_i32_13 : i32
    %17 = arith.extui %16 : i1 to i32
    %c0_i32_14 = arith.constant 0 : i32
    %18 = arith.cmpi ne, %17, %c0_i32_14 : i32
    scf.if %18 {
      %c0_18 = arith.constant 0 : index
      %c0_19 = arith.constant 0 : index
      %24 = vector.load %arg10[%c0_18, %c0_19] : memref<32x128xf32, #tpu.memory_space<vmem>>, vector<32x128xf32>
      %c0_20 = arith.constant 0 : index
      %c0_21 = arith.constant 0 : index
      %25 = vector.load %arg11[%c0_20, %c0_21] : memref<32x128xf32, #tpu.memory_space<vmem>>, vector<32x128xf32>
      %26 = arith.truncf %25 : vector<32x128xf32> to vector<32x128xbf16>
      %c0_22 = arith.constant 0 : index
      %c0_23 = arith.constant 0 : index
      %c0_24 = arith.constant 0 : index
      %27 = vector.load %arg6[%c0_22, %c0_23, %c0_24] : memref<1x128x128xbf16, #tpu.memory_space<vmem>>, vector<1x128x128xbf16>
      %28 = vector.shape_cast %27 : vector<1x128x128xbf16> to vector<128x128xbf16>
      %cst_25 = arith.constant dense<0.000000e+00> : vector<32x128xf32>
      %29 = tpu.matmul %26, %28, %cst_25 {dimension_numbers = #tpu.dot_dimension_numbers<[1], [0], [0], [1], [0, 0, 1, 1], [], []>} : vector<32x128xbf16>, vector<128x128xbf16>, vector<32x128xf32> -> vector<32x128xf32>
      %30 = arith.addf %24, %29 : vector<32x128xf32>
      %c0_26 = arith.constant 0 : index
      %c0_27 = arith.constant 0 : index
      %31 = vector.load %arg10[%c0_26, %c0_27] : memref<32x128xf32, #tpu.memory_space<vmem>>, vector<32x128xf32>
      tpu.vector_store %arg10[%c0_26, %c0_27], %30 {strides = array<i32>} : memref<32x128xf32, #tpu.memory_space<vmem>>, vector<32x128xf32>,
    } else {
    }
    %c0_i32_15 = arith.constant 0 : i32
    %19 = arith.cmpi eq, %arg1, %c0_i32_15 : i32
    %c0_i32_16 = arith.constant 0 : i32
    %20 = arith.cmpi eq, %arg2, %c0_i32_16 : i32
    %21 = arith.andi %19, %20 : i1
    %22 = arith.extui %21 : i1 to i32
    %c0_i32_17 = arith.constant 0 : i32
    %23 = arith.cmpi ne, %22, %c0_i32_17 : i32
    scf.if %23 {
      %c0_18 = arith.constant 0 : index
      %c0_19 = arith.constant 0 : index
      %24 = vector.load %arg10[%c0_18, %c0_19] : memref<32x128xf32, #tpu.memory_space<vmem>>, vector<32x128xf32>
      %c0_20 = arith.constant 0 : index
      %c0_21 = arith.constant 0 : index
      %25 = vector.load %arg7[%c0_20, %c0_21] : memref<32x128xbf16, #tpu.memory_space<vmem>>, vector<32x128xbf16>
      %c0_22 = arith.constant 0 : index
      %c0_23 = arith.constant 0 : index
      %26 = vector.load %arg8[%c0_22, %c0_23] : memref<128x128xbf16, #tpu.memory_space<vmem>>, vector<128x128xbf16>
      %cst_24 = arith.constant dense<0.000000e+00> : vector<32x128xf32>
      %27 = tpu.matmul %25, %26, %cst_24 {dimension_numbers = #tpu.dot_dimension_numbers<[1], [0], [0], [1], [0, 0, 1, 1], [], []>} : vector<32x128xbf16>, vector<128x128xbf16>, vector<32x128xf32> -> vector<32x128xf32>
      %28 = arith.addf %24, %27 : vector<32x128xf32>
      %c0_25 = arith.constant 0 : index
      %c0_26 = arith.constant 0 : index
      %29 = vector.load %arg9[%c0_25, %c0_26] : memref<1x128xf32, #tpu.memory_space<vmem>>, vector<1x128xf32>
      %30 = vector.broadcast %29 : vector<1x128xf32> to vector<32x128xf32>
      %31 = arith.addf %28, %30 : vector<32x128xf32>
      %cst_27 = arith.constant 0.000000e+00 : f32
      %32 = vector.broadcast %cst_27 : f32 to vector<32x128xf32>
      %33 = arith.maximumf %31, %32 : vector<32x128xf32>
      %c0_28 = arith.constant 0 : index
      %c0_29 = arith.constant 0 : index
      %34 = vector.load %arg10[%c0_28, %c0_29] : memref<32x128xf32, #tpu.memory_space<vmem>>, vector<32x128xf32>
      tpu.vector_store %arg10[%c0_28, %c0_29], %33 {strides = array<i32>} : memref<32x128xf32, #tpu.memory_space<vmem>>, vector<32x128xf32>,
    } else {
    }
    return
  }
  func.func @transform_0(%arg0: i32, %arg1: i32, %arg2: i32, %arg3: memref<1xi32, #tpu.memory_space<smem>>) -> (i32, i32, i32) {
    %c0_i32 = arith.constant 0 : i32
    return %arg1, %arg0, %arg2 : i32, i32, i32
  }
  func.func @transform_1(%arg0: i32, %arg1: i32, %arg2: i32, %arg3: memref<1xi32, #tpu.memory_space<smem>>) -> (i32, i32, i32) {
    %0 = arith.index_cast %arg1 : i32 to index
    %1 = memref.load %arg3[%0] : memref<1xi32, #tpu.memory_space<smem>>
    %c0_i32 = arith.constant 0 : i32
    %c0_i32_0 = arith.constant 0 : i32
    return %1, %arg2, %c0_i32 : i32, i32, i32
  }
  func.func @transform_2(%arg0: i32, %arg1: i32, %arg2: i32, %arg3: memref<1xi32, #tpu.memory_space<smem>>) -> (i32, i32, i32) {
    %c0_i32 = arith.constant 0 : i32
    %c0_i32_0 = arith.constant 0 : i32
    %c0_i32_1 = arith.constant 0 : i32
    return %arg1, %c0_i32, %c0_i32_0 : i32, i32, i32
  }
  func.func @transform_3(%arg0: i32, %arg1: i32, %arg2: i32, %arg3: memref<1xi32, #tpu.memory_space<smem>>) -> (i32, i32) {
    %c0_i32 = arith.constant 0 : i32
    %c0_i32_0 = arith.constant 0 : i32
    return %arg0, %c0_i32 : i32, i32
  }
  func.func @transform_4(%arg0: i32, %arg1: i32, %arg2: i32, %arg3: memref<1xi32, #tpu.memory_space<smem>>) -> (i32, i32) {
    %c0_i32 = arith.constant 0 : i32
    %c0_i32_0 = arith.constant 0 : i32
    %c0_i32_1 = arith.constant 0 : i32
    return %c0_i32, %c0_i32_0 : i32, i32
  }
  func.func @transform_5(%arg0: i32, %arg1: i32, %arg2: i32, %arg3: memref<1xi32, #tpu.memory_space<smem>>) -> (i32, i32) {
    %c0_i32 = arith.constant 0 : i32
    %c0_i32_0 = arith.constant 0 : i32
    %c0_i32_1 = arith.constant 0 : i32
    return %c0_i32, %c0_i32_0 : i32, i32
  }
  func.func @transform_6(%arg0: i32, %arg1: i32, %arg2: i32, %arg3: memref<1xi32, #tpu.memory_space<smem>>) -> (i32, i32) {
    %c0_i32 = arith.constant 0 : i32
    %c0_i32_0 = arith.constant 0 : i32
    return %arg0, %c0_i32 : i32, i32
  }
}

</mosaic_0001>

<llo_original>
// kernel: tpu_custom_call.1
$region0: #{tpu_custom_call.1}
  #allocation0 [shape = 'u32[]', space=smem, size = 0x4, offset = 0x4, fixed_abs, tag = 'smem constant byte address 0x4 - core index']
  #allocation1 [shape = 'u32[72,128]{1,0:T(1,128)}', space=vmem, size = 0x9000, scoped, tag = 'internal scratch']
  #allocation2 [shape = 'f32[32,128]{1,0:T(8,128)}', space=vmem, size = 0x4000, scoped, tag = 'scratch operand']
  #allocation3 [shape = 's32[1]{0}', space=sflag, size = 0x4, scoped, tag = 'scoped memory for tpu_custom_call.1']
  #allocation4 [shape = 's32[1]{0:T(128)S(6)}', space=smem, size = 0x200, scoped, tag = 'prefetched SMEM operand 0']
  %s0 = inlined_call_operand.<no memory space> [shape: s32[1], index: 0, kind: input, shape index: {}]
  %s1 = inlined_call_operand.hbm [shape: bf16[1,32,128], index: 1, kind: input, shape index: {}]
  %s2 = inlined_call_operand.hbm [shape: bf16[1,128,128], index: 2, kind: input, shape index: {}]
  %s3 = inlined_call_operand.hbm [shape: bf16[1,128,128], index: 3, kind: input, shape index: {}]
  %s4 = inlined_call_operand.hbm [shape: bf16[32,128], index: 4, kind: input, shape index: {}]
  %s5 = inlined_call_operand.hbm [shape: bf16[128,128], index: 5, kind: input, shape index: {}]
  %s6 = inlined_call_operand.vmem [shape: f32[1,128], index: 6, kind: input, shape index: {}]
  %s7 = inlined_call_operand.hbm [shape: f32[32,128], index: 7, kind: output, shape index: {}]
  %s8 = sld [smem:[#allocation0]]
  $region70: #{tpu_custom_call.1} parent=0
    _
  %s10 = ssub.s32 1, %s8
  %s11 = scalar_select 0, %s10, %s8
  %12 = sst [smem:[#allocation4]] %s0
  $region1: #{tpu_custom_call.1} parent=0
    #allocation5 [shape = 'u8[8192]{0}', space=vmem, size = 0x2000, scoped, tag = 'input window, operand 1, single buffered']
    #allocation6 [shape = 's32[1]{0}', space=sflag, size = 0x4, scoped, tag = 'scoped memory for tpu_custom_call.1']
    #allocation7 [shape = 's32[1]{0}', space=sflag, size = 0x4, scoped, tag = 'scoped memory for tpu_custom_call.1']
    #allocation8 [shape = 'u8[32768]{0}', space=vmem, size = 0x8000, scoped, tag = 'input window, operand 2, single buffered']
    #allocation9 [shape = 's32[1]{0}', space=sflag, size = 0x4, scoped, tag = 'scoped memory for tpu_custom_call.1']
    #allocation10 [shape = 'u8[32768]{0}', space=vmem, size = 0x8000, scoped, tag = 'input window, operand 3, single buffered']
    #allocation11 [shape = 'u8[8192]{0}', space=vmem, size = 0x2000, scoped, tag = 'input window, operand 4, single buffered']
    #allocation12 [shape = 's32[1]{0}', space=sflag, size = 0x4, scoped, tag = 'scoped memory for tpu_custom_call.1']
    #allocation13 [shape = 'u8[32768]{0}', space=vmem, size = 0x8000, scoped, tag = 'input window, operand 5, single buffered']
    #allocation14 [shape = 'u8[16384]{0}', space=vmem, size = 0x4000, scoped, tag = 'output window, operand 0, single buffered']
    %13 = vsyncpa [#allocation6], 0
    %14 = vsyncpa [#allocation9], 0
    %15 = vsyncpa [#allocation12], 0
    %16 = vsyncpa [#allocation7], 0
    // Predicated region
    $region2: #{tpu_custom_call.1} parent=1 // pred_check
      _
    $region3: #{tpu_custom_call.1} parent=1 // pred_check_branch
      %18 = sbr.rel (0) target = $region5
    $region4: #{tpu_custom_call.1} parent=1 // pred_region
      %20 = vsyncadd [#allocation6], 0
      %s21 = sshll.u32 %s1, 4
      %s22 = int_to_ptr.hbm [resolvable:$true] %s21
      %s23 = sshll.u32 [#allocation5], 4
      %s24 = int_to_ptr.vmem [resolvable:$true] %s23
      %29 = dma.hbm_to_vmem [thread:$0]  %s22, 256, %s24, [#allocation6], 64, 64, 4
    $region5: #{tpu_custom_call.1} parent=1 // pred_fallthru
      _
    // Predicated region
    $region6: #{tpu_custom_call.1} parent=1 // pred_check
      _
    $region7: #{tpu_custom_call.1} parent=1 // pred_check_branch
      %31 = sbr.rel (0) target = $region9
    $region8: #{tpu_custom_call.1} parent=1 // pred_region
      %s32 = sld [smem:[#allocation4]]
      %34 = vsyncadd [#allocation9], 0
      %s35 = smul.addr %s32, 16
      %s36 = smul.addr %s35, 4
      %s37 = scalar_lea.hbm %s2, %s36
      %s38 = sshll.u32 %s37, 4
      %s39 = int_to_ptr.hbm [resolvable:$true] %s38
      %s40 = sshll.u32 [#allocation8], 4
      %s41 = int_to_ptr.vmem [resolvable:$true] %s40
      %46 = dma.hbm_to_vmem [thread:$0]  %s39, 1024, %s41, [#allocation9], 64, 64, 4
    $region9: #{tpu_custom_call.1} parent=1 // pred_fallthru
      _
    // Predicated region
    $region10: #{tpu_custom_call.1} parent=1 // pred_check
      _
    $region11: #{tpu_custom_call.1} parent=1 // pred_check_branch
      %48 = sbr.rel (0) target = $region13
    $region12: #{tpu_custom_call.1} parent=1 // pred_region
      %50 = vsyncadd [#allocation9], 0
      %s51 = sshll.u32 %s3, 4
      %s52 = int_to_ptr.hbm [resolvable:$true] %s51
      %s53 = sshll.u32 [#allocation10], 4
      %s54 = int_to_ptr.vmem [resolvable:$true] %s53
      %59 = dma.hbm_to_vmem [thread:$0]  %s52, 1024, %s54, [#allocation9], 64, 64, 4
    $region13: #{tpu_custom_call.1} parent=1 // pred_fallthru
      _
    // Predicated region
    $region14: #{tpu_custom_call.1} parent=1 // pred_check
      _
    $region15: #{tpu_custom_call.1} parent=1 // pred_check_branch
      %61 = sbr.rel (0) target = $region17
    $region16: #{tpu_custom_call.1} parent=1 // pred_region
      %63 = vsyncadd [#allocation12], 0
      %s64 = sshll.u32 %s4, 4
      %s65 = int_to_ptr.hbm [resolvable:$true] %s64
      %s66 = sshll.u32 [#allocation11], 4
      %s67 = int_to_ptr.vmem [resolvable:$true] %s66
      %72 = dma.hbm_to_vmem [thread:$0]  %s65, 256, %s67, [#allocation12], 64, 64, 4
    $region17: #{tpu_custom_call.1} parent=1 // pred_fallthru
      _
    // Predicated region
    $region18: #{tpu_custom_call.1} parent=1 // pred_check
      _
    $region19: #{tpu_custom_call.1} parent=1 // pred_check_branch
      %74 = sbr.rel (0) target = $region21
    $region20: #{tpu_custom_call.1} parent=1 // pred_region
      %76 = vsyncadd [#allocation12], 0
      %s77 = sshll.u32 %s5, 4
      %s78 = int_to_ptr.hbm [resolvable:$true] %s77
      %s79 = sshll.u32 [#allocation13], 4
      %s80 = int_to_ptr.vmem [resolvable:$true] %s79
      %85 = dma.hbm_to_vmem [thread:$0]  %s78, 1024, %s80, [#allocation12], 64, 64, 4
    $region21: #{tpu_custom_call.1} parent=1 // pred_fallthru
      _
    // Predicated region
    $region22: #{tpu_custom_call.1} parent=1 // pred_check
      _
    $region23: #{tpu_custom_call.1} parent=1 // pred_check_branch
      %87 = sbr.rel (0) target = $region25
    $region24: #{tpu_custom_call.1} parent=1 // pred_region
      _
    $region25: #{tpu_custom_call.1} parent=1 // pred_fallthru
      _
    // Predicated region
    $region26: #{tpu_custom_call.1} parent=1 // pred_check
      _
    $region27: #{tpu_custom_call.1} parent=1 // pred_check_branch
      %89 = sbr.rel (0) target = $region29
    $region28: #{tpu_custom_call.1} parent=1 // pred_region
      %91 = dma.done [#allocation6], 256
    $region29: #{tpu_custom_call.1} parent=1 // pred_fallthru
      _
    // Predicated region
    $region30: #{tpu_custom_call.1} parent=1 // pred_check
      _
    $region31: #{tpu_custom_call.1} parent=1 // pred_check_branch
      %93 = sbr.rel (0) target = $region33
    $region32: #{tpu_custom_call.1} parent=1 // pred_region
      %95 = dma.done [#allocation9], 1024
    $region33: #{tpu_custom_call.1} parent=1 // pred_fallthru
      _
    // Predicated region
    $region34: #{tpu_custom_call.1} parent=1 // pred_check
      _
    $region35: #{tpu_custom_call.1} parent=1 // pred_check_branch
      %97 = sbr.rel (0) target = $region37
    $region36: #{tpu_custom_call.1} parent=1 // pred_region
      %99 = dma.done [#allocation9], 1024
    $region37: #{tpu_custom_call.1} parent=1 // pred_fallthru
      _
    // Predicated region
    $region38: #{tpu_custom_call.1} parent=1 // pred_check
      _
    $region39: #{tpu_custom_call.1} parent=1 // pred_check_branch
      %101 = sbr.rel (0) target = $region41
    $region40: #{tpu_custom_call.1} parent=1 // pred_region
      %103 = dma.done [#allocation12], 256
    $region41: #{tpu_custom_call.1} parent=1 // pred_fallthru
      _
    // Predicated region
    $region42: #{tpu_custom_call.1} parent=1 // pred_check
      _
    $region43: #{tpu_custom_call.1} parent=1 // pred_check_branch
      %105 = sbr.rel (0) target = $region45
    $region44: #{tpu_custom_call.1} parent=1 // pred_region
      %107 = dma.done [#allocation12], 1024
    $region45: #{tpu_custom_call.1} parent=1 // pred_fallthru
      _
    %s108 = sld [smem:[#allocation4]]
    %p109 = scmp.eq.s32.totalorder 0, 0
    %p110 = scmp.eq.s32.totalorder 0, 0
    %p111 = pnand %p109, %p110
    %p112 = pneg %p111
    // Predicated region
    $region46: #{tpu_custom_call.1} parent=1 // pred_check
      _
    $region47: #{tpu_custom_call.1} parent=1 // pred_check_branch
      %114 = sbr.rel (%p111) target = $region49
    $region48: #{tpu_custom_call.1} parent=1 // pred_region
      %115 = vst [vmem:[#allocation14] sm:$0xff] 0.0
      %116 = vst [vmem:[#allocation14 + $0x8] sm:$0xff] 0.0
      %117 = vst [vmem:[#allocation14 + $0x10] sm:$0xff] 0.0
      %118 = vst [vmem:[#allocation14 + $0x18] sm:$0xff] 0.0
    $region49: #{tpu_custom_call.1} parent=1 // pred_fallthru
      _
    // Predicated region
    $region50: #{tpu_custom_call.1} parent=1 // pred_check
      %p119 = pneg %p110
    $region51: #{tpu_custom_call.1} parent=1 // pred_check_branch
      %121 = sbr.rel (%p119) target = $region53
    $region52: #{tpu_custom_call.1} parent=1 // pred_region
      %122 = vst [vmem:[#allocation2] sm:$0xff] 0.0
      %123 = vst [vmem:[#allocation2 + $0x8] sm:$0xff] 0.0
      %124 = vst [vmem:[#allocation2 + $0x10] sm:$0xff] 0.0
      %125 = vst [vmem:[#allocation2 + $0x18] sm:$0xff] 0.0
    $region53: #{tpu_custom_call.1} parent=1 // pred_fallthru
      _
    %v126 = vld [vmem:[#allocation2] sm:$0xff]
    %v127 = vld [vmem:[#allocation2 + $0x8] sm:$0xff]
    %v128 = vld [vmem:[#allocation2 + $0x10] sm:$0xff]
    %v129 = vld [vmem:[#allocation2 + $0x18] sm:$0xff]
    %v130 = vld [vmem:[#allocation5] sm:$0xf]
    %v131 = vld [vmem:[#allocation5 + $0x4] sm:$0xf]
    %v132 = vld [vmem:[#allocation5 + $0x8] sm:$0xf]
    %v133 = vld [vmem:[#allocation5 + $0xc] sm:$0xf]
    %v134 = vld [vmem:[#allocation8] sm:$0xf]
    %v135 = vld [vmem:[#allocation8 + $0x4] sm:$0xf]
    %v136 = vld [vmem:[#allocation8 + $0x8] sm:$0xf]
    %v137 = vld [vmem:[#allocation8 + $0xc] sm:$0xf]
    %v138 = vld [vmem:[#allocation8 + $0x10] sm:$0xf]
    %v139 = vld [vmem:[#allocation8 + $0x14] sm:$0xf]
    %v140 = vld [vmem:[#allocation8 + $0x18] sm:$0xf]
    %v141 = vld [vmem:[#allocation8 + $0x1c] sm:$0xf]
    %v142 = vld [vmem:[#allocation8 + $0x20] sm:$0xf]
    %v143 = vld [vmem:[#allocation8 + $0x24] sm:$0xf]
    %v144 = vld [vmem:[#allocation8 + $0x28] sm:$0xf]
    %v145 = vld [vmem:[#allocation8 + $0x2c] sm:$0xf]
    %v146 = vld [vmem:[#allocation8 + $0x30] sm:$0xf]
    %v147 = vld [vmem:[#allocation8 + $0x34] sm:$0xf]
    %v148 = vld [vmem:[#allocation8 + $0x38] sm:$0xf]
    %v149 = vld [vmem:[#allocation8 + $0x3c] sm:$0xf]
    %v154 = vunpack.c.l.b16 %v130
    %v155 = vunpack.c.l.b16 %v131
    %v156 = vunpack.c.l.b16 %v132
    %v157 = vunpack.c.l.b16 %v133
    %v158 = vpack.c.b16 %v155, %v154
    %v159 = vpack.c.b16 %v157, %v156
    %v178 = vunpack.c.l.b16 %v134
    %v179 = vunpack.c.l.b16 %v135
    %v180 = vunpack.c.l.b16 %v136
    %v181 = vunpack.c.l.b16 %v137
    %v182 = vunpack.c.l.b16 %v138
    %v183 = vunpack.c.l.b16 %v139
    %v184 = vunpack.c.l.b16 %v140
    %v185 = vunpack.c.l.b16 %v141
    %v186 = vunpack.c.l.b16 %v142
    %v187 = vunpack.c.l.b16 %v143
    %v188 = vunpack.c.l.b16 %v144
    %v189 = vunpack.c.l.b16 %v145
    %v190 = vunpack.c.l.b16 %v146
    %v191 = vunpack.c.l.b16 %v147
    %v192 = vunpack.c.l.b16 %v148
    %v193 = vunpack.c.l.b16 %v149
    %v194 = vpack.c.b16 %v179, %v178
    %v195 = vpack.c.b16 %v181, %v180
    %v196 = vpack.c.b16 %v183, %v182
    %v197 = vpack.c.b16 %v185, %v184
    %v198 = vpack.c.b16 %v187, %v186
    %v199 = vpack.c.b16 %v189, %v188
    %v200 = vpack.c.b16 %v191, %v190
    %v201 = vpack.c.b16 %v193, %v192
    %210 = vmatpush.bf16.msra.mxu0 %v201
    %211 = vmatpush.bf16.msra.mxu0 %v200
    %212 = vmatpush.bf16.msra.mxu0 %v199
    %213 = vmatpush.bf16.msra.mxu0 %v198
    %214 = vmatpush.bf16.msra.mxu0 %v197
    %215 = vmatpush.bf16.msra.mxu0 %v196
    %216 = vmatpush.bf16.msra.mxu0 %v195
    %217 = vmatpush.bf16.msra.mxu0 %v194
    %218 = vmatmul.bf16.gmra.mxu0 %v158
    %v219 = vpop.f32.mrf.mxu0
    %v220 = vadd.f32 0.0, %v219
    %v221 = vpop.f32.mrf.mxu0
    %v222 = vadd.f32 0.0, %v221
    %223 = vmatmul.bf16.gmra.mxu0 %v159
    %v224 = vpop.f32.mrf.mxu0
    %v225 = vadd.f32 0.0, %v224
    %v226 = vpop.f32.mrf.mxu0
    %v227 = vadd.f32 0.0, %v226
    %228 = vdwg.mxu0
    %v229 = vadd.f32 %v126, %v220
    %v230 = vadd.f32 %v127, %v222
    %v231 = vadd.f32 %v128, %v225
    %v232 = vadd.f32 %v129, %v227
    %233 = vst [vmem:[#allocation2] sm:$0xff] %v229
    %234 = vst [vmem:[#allocation2 + $0x8] sm:$0xff] %v230
    %235 = vst [vmem:[#allocation2 + $0x10] sm:$0xff] %v231
    %236 = vst [vmem:[#allocation2 + $0x18] sm:$0xff] %v232
    // Predicated region
    $region54: #{tpu_custom_call.1} parent=1 // pred_check
      %p237 = pneg %p110
    $region55: #{tpu_custom_call.1} parent=1 // pred_check_branch
      %239 = sbr.rel (%p237) target = $region57
    $region56: #{tpu_custom_call.1} parent=1 // pred_region
      %v240 = vld [vmem:[#allocation14] sm:$0xff]
      %v241 = vld [vmem:[#allocation14 + $0x8] sm:$0xff]
      %v242 = vld [vmem:[#allocation14 + $0x10] sm:$0xff]
      %v243 = vld [vmem:[#allocation14 + $0x18] sm:$0xff]
      %v244 = vld [vmem:[#allocation2] sm:$0xff]
      %v245 = vld [vmem:[#allocation2 + $0x8] sm:$0xff]
      %v246 = vld [vmem:[#allocation2 + $0x10] sm:$0xff]
      %v247 = vld [vmem:[#allocation2 + $0x18] sm:$0xff]
      %v248 = vpack.c.bf16 %v245, %v244
      %v249 = vpack.c.bf16 %v247, %v246
      %v250 = vld [vmem:[#allocation10] sm:$0xf]
      %v251 = vld [vmem:[#allocation10 + $0x4] sm:$0xf]
      %v252 = vld [vmem:[#allocation10 + $0x8] sm:$0xf]
      %v253 = vld [vmem:[#allocation10 + $0xc] sm:$0xf]
      %v254 = vld [vmem:[#allocation10 + $0x10] sm:$0xf]
      %v255 = vld [vmem:[#allocation10 + $0x14] sm:$0xf]
      %v256 = vld [vmem:[#allocation10 + $0x18] sm:$0xf]
      %v257 = vld [vmem:[#allocation10 + $0x1c] sm:$0xf]
      %v258 = vld [vmem:[#allocation10 + $0x20] sm:$0xf]
      %v259 = vld [vmem:[#allocation10 + $0x24] sm:$0xf]
      %v260 = vld [vmem:[#allocation10 + $0x28] sm:$0xf]
      %v261 = vld [vmem:[#allocation10 + $0x2c] sm:$0xf]
      %v262 = vld [vmem:[#allocation10 + $0x30] sm:$0xf]
      %v263 = vld [vmem:[#allocation10 + $0x34] sm:$0xf]
      %v264 = vld [vmem:[#allocation10 + $0x38] sm:$0xf]
      %v265 = vld [vmem:[#allocation10 + $0x3c] sm:$0xf]
      %v282 = vunpack.c.l.b16 %v250
      %v283 = vunpack.c.l.b16 %v251
      %v284 = vunpack.c.l.b16 %v252
      %v285 = vunpack.c.l.b16 %v253
      %v286 = vunpack.c.l.b16 %v254
      %v287 = vunpack.c.l.b16 %v255
      %v288 = vunpack.c.l.b16 %v256
      %v289 = vunpack.c.l.b16 %v257
      %v290 = vunpack.c.l.b16 %v258
      %v291 = vunpack.c.l.b16 %v259
      %v292 = vunpack.c.l.b16 %v260
      %v293 = vunpack.c.l.b16 %v261
      %v294 = vunpack.c.l.b16 %v262
      %v295 = vunpack.c.l.b16 %v263
      %v296 = vunpack.c.l.b16 %v264
      %v297 = vunpack.c.l.b16 %v265
      %v298 = vpack.c.b16 %v283, %v282
      %v299 = vpack.c.b16 %v285, %v284
      %v300 = vpack.c.b16 %v287, %v286
      %v301 = vpack.c.b16 %v289, %v288
      %v302 = vpack.c.b16 %v291, %v290
      %v303 = vpack.c.b16 %v293, %v292
      %v304 = vpack.c.b16 %v295, %v294
      %v305 = vpack.c.b16 %v297, %v296
      %314 = vmatpush.bf16.msra.mxu0 %v305
      %315 = vmatpush.bf16.msra.mxu0 %v304
      %316 = vmatpush.bf16.msra.mxu0 %v303
      %317 = vmatpush.bf16.msra.mxu0 %v302
      %318 = vmatpush.bf16.msra.mxu0 %v301
      %319 = vmatpush.bf16.msra.mxu0 %v300
      %320 = vmatpush.bf16.msra.mxu0 %v299
      %321 = vmatpush.bf16.msra.mxu0 %v298
      %322 = vmatmul.bf16.gmra.mxu0 %v248
      %v323 = vpop.f32.mrf.mxu0
      %v324 = vadd.f32 0.0, %v323
      %v325 = vpop.f32.mrf.mxu0
      %v326 = vadd.f32 0.0, %v325
      %327 = vmatmul.bf16.gmra.mxu0 %v249
      %v328 = vpop.f32.mrf.mxu0
      %v329 = vadd.f32 0.0, %v328
      %v330 = vpop.f32.mrf.mxu0
      %v331 = vadd.f32 0.0, %v330
      %332 = vdwg.mxu0
      %v333 = vadd.f32 %v240, %v324
      %v334 = vadd.f32 %v241, %v326
      %v335 = vadd.f32 %v242, %v329
      %v336 = vadd.f32 %v243, %v331
      %337 = vst [vmem:[#allocation14] sm:$0xff] %v333
      %338 = vst [vmem:[#allocation14 + $0x8] sm:$0xff] %v334
      %339 = vst [vmem:[#allocation14 + $0x10] sm:$0xff] %v335
      %340 = vst [vmem:[#allocation14 + $0x18] sm:$0xff] %v336
    $region57: #{tpu_custom_call.1} parent=1 // pred_fallthru
      _
    // Predicated region
    $region58: #{tpu_custom_call.1} parent=1 // pred_check
      _
    $region59: #{tpu_custom_call.1} parent=1 // pred_check_branch
      %342 = sbr.rel (%p111) target = $region61
    $region60: #{tpu_custom_call.1} parent=1 // pred_region
      %v343 = vld [vmem:[#allocation14] sm:$0xff]
      %v344 = vld [vmem:[#allocation14 + $0x8] sm:$0xff]
      %v345 = vld [vmem:[#allocation14 + $0x10] sm:$0xff]
      %v346 = vld [vmem:[#allocation14 + $0x18] sm:$0xff]
      %v347 = vld [vmem:[#allocation11] sm:$0xf]
      %v348 = vld [vmem:[#allocation11 + $0x4] sm:$0xf]
      %v349 = vld [vmem:[#allocation11 + $0x8] sm:$0xf]
      %v350 = vld [vmem:[#allocation11 + $0xc] sm:$0xf]
      %v351 = vld [vmem:[#allocation13] sm:$0xf]
      %v352 = vld [vmem:[#allocation13 + $0x4] sm:$0xf]
      %v353 = vld [vmem:[#allocation13 + $0x8] sm:$0xf]
      %v354 = vld [vmem:[#allocation13 + $0xc] sm:$0xf]
      %v355 = vld [vmem:[#allocation13 + $0x10] sm:$0xf]
      %v356 = vld [vmem:[#allocation13 + $0x14] sm:$0xf]
      %v357 = vld [vmem:[#allocation13 + $0x18] sm:$0xf]
      %v358 = vld [vmem:[#allocation13 + $0x1c] sm:$0xf]
      %v359 = vld [vmem:[#allocation13 + $0x20] sm:$0xf]
      %v360 = vld [vmem:[#allocation13 + $0x24] sm:$0xf]
      %v361 = vld [vmem:[#allocation13 + $0x28] sm:$0xf]
      %v362 = vld [vmem:[#allocation13 + $0x2c] sm:$0xf]
      %v363 = vld [vmem:[#allocation13 + $0x30] sm:$0xf]
      %v364 = vld [vmem:[#allocation13 + $0x34] sm:$0xf]
      %v365 = vld [vmem:[#allocation13 + $0x38] sm:$0xf]
      %v366 = vld [vmem:[#allocation13 + $0x3c] sm:$0xf]
      %v371 = vunpack.c.l.b16 %v347
      %v372 = vunpack.c.l.b16 %v348
      %v373 = vunpack.c.l.b16 %v349
      %v374 = vunpack.c.l.b16 %v350
      %v375 = vpack.c.b16 %v372, %v371
      %v376 = vpack.c.b16 %v374, %v373
      %v395 = vunpack.c.l.b16 %v351
      %v396 = vunpack.c.l.b16 %v352
      %v397 = vunpack.c.l.b16 %v353
      %v398 = vunpack.c.l.b16 %v354
      %v399 = vunpack.c.l.b16 %v355
      %v400 = vunpack.c.l.b16 %v356
      %v401 = vunpack.c.l.b16 %v357
      %v402 = vunpack.c.l.b16 %v358
      %v403 = vunpack.c.l.b16 %v359
      %v404 = vunpack.c.l.b16 %v360
      %v405 = vunpack.c.l.b16 %v361
      %v406 = vunpack.c.l.b16 %v362
      %v407 = vunpack.c.l.b16 %v363
      %v408 = vunpack.c.l.b16 %v364
      %v409 = vunpack.c.l.b16 %v365
      %v410 = vunpack.c.l.b16 %v366
      %v411 = vpack.c.b16 %v396, %v395
      %v412 = vpack.c.b16 %v398, %v397
      %v413 = vpack.c.b16 %v400, %v399
      %v414 = vpack.c.b16 %v402, %v401
      %v415 = vpack.c.b16 %v404, %v403
      %v416 = vpack.c.b16 %v406, %v405
      %v417 = vpack.c.b16 %v408, %v407
      %v418 = vpack.c.b16 %v410, %v409
      %427 = vmatpush.bf16.msra.mxu0 %v418
      %428 = vmatpush.bf16.msra.mxu0 %v417
      %429 = vmatpush.bf16.msra.mxu0 %v416
      %430 = vmatpush.bf16.msra.mxu0 %v415
      %431 = vmatpush.bf16.msra.mxu0 %v414
      %432 = vmatpush.bf16.msra.mxu0 %v413
      %433 = vmatpush.bf16.msra.mxu0 %v412
      %434 = vmatpush.bf16.msra.mxu0 %v411
      %435 = vmatmul.bf16.gmra.mxu0 %v375
      %v436 = vpop.f32.mrf.mxu0
      %v437 = vadd.f32 0.0, %v436
      %v438 = vpop.f32.mrf.mxu0
      %v439 = vadd.f32 0.0, %v438
      %440 = vmatmul.bf16.gmra.mxu0 %v376
      %v441 = vpop.f32.mrf.mxu0
      %v442 = vadd.f32 0.0, %v441
      %v443 = vpop.f32.mrf.mxu0
      %v444 = vadd.f32 0.0, %v443
      %445 = vdwg.mxu0
      %v446 = vadd.f32 %v343, %v437
      %v447 = vadd.f32 %v344, %v439
      %v448 = vadd.f32 %v345, %v442
      %v449 = vadd.f32 %v346, %v444
      %v450 = vld [vmem:[%s6] sm:$0x1]
      %v452 = vperm.slane %v450, 0
      %v454 = vadd.f32 %v446, %v452
      %v455 = vadd.f32 %v447, %v452
      %v456 = vadd.f32 %v448, %v452
      %v457 = vadd.f32 %v449, %v452
      %v458 = vmax.f32 %v454, 0.0
      %v459 = vmax.f32 %v455, 0.0
      %v460 = vmax.f32 %v456, 0.0
      %v461 = vmax.f32 %v457, 0.0
      %462 = vst [vmem:[#allocation14] sm:$0xff] %v458
      %463 = vst [vmem:[#allocation14 + $0x8] sm:$0xff] %v459
      %464 = vst [vmem:[#allocation14 + $0x10] sm:$0xff] %v460
      %465 = vst [vmem:[#allocation14 + $0x18] sm:$0xff] %v461
    $region61: #{tpu_custom_call.1} parent=1 // pred_fallthru
      _
    // Predicated region
    $region62: #{tpu_custom_call.1} parent=1 // pred_check
      _
    $region63: #{tpu_custom_call.1} parent=1 // pred_check_branch
      %467 = sbr.rel (0) target = $region65
    $region64: #{tpu_custom_call.1} parent=1 // pred_region
      %469 = vsyncadd [#allocation7], 0
      %s470 = sshll.u32 [#allocation14], 4
      %s471 = int_to_ptr.vmem [resolvable:$true] %s470
      %s472 = sshll.u32 %s7, 4
      %s473 = int_to_ptr.hbm [resolvable:$true] %s472
      %478 = dma.vmem_to_hbm [thread:$0]  %s471, 512, %s473, [#allocation7], 128, 128, 8
    $region65: #{tpu_custom_call.1} parent=1 // pred_fallthru
      _
    // Predicated region
    $region66: #{tpu_custom_call.1} parent=1 // pred_check
      _
    $region67: #{tpu_custom_call.1} parent=1 // pred_check_branch
      %480 = sbr.rel (0) target = $region69
    $region68: #{tpu_custom_call.1} parent=1 // pred_region
      %482 = dma.done [#allocation7], 512
    $region69: #{tpu_custom_call.1} parent=1 // pred_fallthru
      _
    %483 = vsyncpa [#allocation6], 1
    %484 = vsyncpa [#allocation9], 1
    %485 = vsyncpa [#allocation12], 1
    %486 = vsyncpa [#allocation7], 1

</llo_original>
